<compile_context>
chip_gen: v5e
topology: v5e:2x2
jax: 0.10.0
libtpu: 0.0.40
codegen_flags: <defaults>
</compile_context>

<pallas_src>
import functools

import jax
import jax.numpy as jnp
from jax.experimental import pallas as pl
from jax.experimental.pallas import tpu as pltpu

LEAKY_SLOPE = 0.01          # F.leaky_relu default negative_slope
LATENT = 16
IMG = 28 * 28
HIDDEN = 128
DEPTH = 4                   # 4 hidden layers of 128, then linear -> 1 (no batch_norm)
TILE_M_MAX = 1024           # row tile for the grid (sweepable to 2048; vmem limit already set)


def _leaky_relu(x):
    return jnp.where(x >= 0, x, LEAKY_SLOPE * x)


# ----------------------------- Pallas kernel --------------------------------
def verdict_mlp_kernel(v_ref, z_ref,
                       w1a_ref, w1b_ref, b1_ref,
                       w2_ref, b2_ref, w3_ref, b3_ref, w4_ref, b4_ref,
                       w5_ref, b5_ref,
                       o_ref):
    """Fused 5-layer MLP over one row tile.

    values/latent arrive as f32 straight from HBM and are cast to bf16 here (free under DMA);
    matmul accumulation and all elementwise work stay f32.  Layer 1 is split into the image
    part (784 cols) and latent part (16 cols) so no concatenated (N,800) array ever exists.
    The final 128->1 layer is a per-row lane reduce on the VPU/XLU (MXU has huge slack in
    this HBM-bound kernel) writing a 1-wide f32 output.
    """
    v = v_ref[...].astype(jnp.bfloat16)
    z = z_ref[...].astype(jnp.bfloat16)
    h = (jnp.dot(v, w1a_ref[...], preferred_element_type=jnp.float32)
         + jnp.dot(z, w1b_ref[...], preferred_element_type=jnp.float32)
         + b1_ref[...])
    h = _leaky_relu(h)
    for w_ref, b_ref in ((w2_ref, b2_ref), (w3_ref, b3_ref), (w4_ref, b4_ref)):
        h = _leaky_relu(
            jnp.dot(h.astype(jnp.bfloat16), w_ref[...],
                    preferred_element_type=jnp.float32) + b_ref[...])
    # Final linear layer (128 -> 1) as a row reduce: out[i] = sum_k h[i,k] * w5[k] + b5.
    o_ref[...] = jnp.sum(h * w5_ref[...], axis=-1, keepdims=True) + b5_ref[...]


def verdict_mlp(p, values_flat, latent):
    """values_flat: (N, 784) f32, latent: (N, 16) f32 -> (N, 1) f32, one gridded Pallas call."""
    n = values_flat.shape[0]

    # Row tile: single full-extent block at small N (no padding/partial blocks); otherwise
    # load-balanced 8-row-aligned tiles (f32 sublane packing), last block handled by Pallas'
    # masked boundary DMA (rows are independent, OOB writes dropped) -> no jnp.pad pass.
    if n <= TILE_M_MAX:
        tile_m = n
    else:
        num_tiles = pl.cdiv(n, TILE_M_MAX)
        tile_m = pl.cdiv(pl.cdiv(n, num_tiles), 8) * 8
    grid = (pl.cdiv(n, tile_m),)

    # Advisory cost for XLA's scheduler (helps at tiny, launch-bound N).
    flops = 2 * n * (IMG * HIDDEN + LATENT * HIDDEN + 3 * HIDDEN * HIDDEN + HIDDEN)
    weight_bytes = (2 * (IMG * HIDDEN + LATENT * HIDDEN + 3 * HIDDEN * HIDDEN)   # bf16 mats
                    + 4 * (4 * HIDDEN + HIDDEN + 1))                             # f32 b1-4,w5,b5
    bytes_accessed = n * 4 * (IMG + LATENT + 1) + weight_bytes

    const = lambda i: (0, 0)                      # weights/biases VMEM-resident across steps
    # TODO(synk): on v7x, pipeline_mode=pl.Buffered(1) on the constant-index weight specs
    # would drop their second VMEM buffer (~0.3 MiB) if TILE_M is pushed to the VMEM limit.
    out = pl.pallas_call(
        verdict_mlp_kernel,
        out_shape=jax.ShapeDtypeStruct((n, 1), jnp.float32),
        grid=grid,
        in_specs=[
            pl.BlockSpec((tile_m, IMG), lambda i: (i, 0)),      # values tile (f32)
            pl.BlockSpec((tile_m, LATENT), lambda i: (i, 0)),   # latent tile (f32)
            pl.BlockSpec((IMG, HIDDEN), const),                 # w1a (bf16)
            pl.BlockSpec((LATENT, HIDDEN), const),              # w1b (bf16)
            pl.BlockSpec((1, HIDDEN), const),                   # b1  (f32)
            pl.BlockSpec((HIDDEN, HIDDEN), const),              # w2
            pl.BlockSpec((1, HIDDEN), const),                   # b2
            pl.BlockSpec((HIDDEN, HIDDEN), const),              # w3
            pl.BlockSpec((1, HIDDEN), const),                   # b3
            pl.BlockSpec((HIDDEN, HIDDEN), const),              # w4
            pl.BlockSpec((1, HIDDEN), const),                   # b4
            pl.BlockSpec((1, HIDDEN), const),                   # w5 row (f32, VPU reduce)
            pl.BlockSpec((1, 1), const),                        # b5 (f32 scalar)
        ],
        out_specs=pl.BlockSpec((tile_m, 1), lambda i: (i, 0)),
        compiler_params=pltpu.CompilerParams(
            dimension_semantics=("parallel",),                  # v7x: shard rows over 2 TCs
            vmem_limit_bytes=48 * 1024 * 1024),                 # headroom for larger tiles (v5e/v7x)
        cost_estimate=pl.CostEstimate(flops=flops, transcendentals=0,
                                      bytes_accessed=bytes_accessed),
    )(values_flat, latent,
      p["w1a"], p["w1b"], p["b1"],
      p["w2"], p["b2"], p["w3"], p["b3"], p["w4"], p["b4"],
      p["w5_row"], p["b5"])
    return out


# ------------------------- parameter initialization -------------------------
def _init_linear(key, fan_in, fan_out):
    kw, kb = jax.random.split(key)
    bound = 1.0 / jnp.sqrt(fan_in)
    w = jax.random.uniform(kw, (fan_in, fan_out), jnp.float32, -bound, bound)
    b = jax.random.uniform(kb, (1, fan_out), jnp.float32, -bound, bound)
    return w, b


def init_params(key):
    keys = jax.random.split(key, 9)
    params = {}
    # verdict MLP: 800 -> 128 -> 128 -> 128 -> 128 -> 1
    dims = [IMG + LATENT] + [HIDDEN] * DEPTH + [1]
    mlp = {}
    for i in range(5):
        w, b = _init_linear(keys[i], dims[i], dims[i + 1])
        mlp[f"w{i + 1}"] = w
        mlp[f"b{i + 1}"] = b
    params["mlp"] = mlp
    # synthetic set-encoder (external module in the original code): 784 -> 64 -> (16, 16)
    we, be = _init_linear(keys[5], IMG, 64)
    wm, bm = _init_linear(keys[6], 64, LATENT)
    wl, bl = _init_linear(keys[7], 64, LATENT)
    params["enc"] = {"we": we, "be": be, "wm": wm, "bm": bm, "wl": wl, "bl": bl}
    return params


def prepare_params(params):
    """One-time prep (hoisted out of the per-call path): split w1, transpose w5 into a lane
    row for the in-kernel reduce, cast MXU weights to bf16 (biases / w5 / accum stay f32)."""
    mlp = params["mlp"]
    prepared_mlp = {
        "w1a": mlp["w1"][:IMG].astype(jnp.bfloat16),
        "w1b": mlp["w1"][IMG:].astype(jnp.bfloat16),
        "b1": mlp["b1"],
        "w2": mlp["w2"].astype(jnp.bfloat16), "b2": mlp["b2"],
        "w3": mlp["w3"].astype(jnp.bfloat16), "b3": mlp["b3"],
        "w4": mlp["w4"].astype(jnp.bfloat16), "b4": mlp["b4"],
        "w5_row": mlp["w5"].T,                 # (1, 128) f32
        "b5": mlp["b5"],                       # (1, 1)   f32
    }
    return {"mlp": prepared_mlp, "enc": params["enc"]}


def encoder_apply(enc, support):
    """support: (B, size, 784) -> mean, logvar each (B, 16).
    Plain-JAX glue: the encoder is an external module passed into Discriminator."""
    h = jnp.maximum(jnp.einsum("bsf,fh->bsh", support, enc["we"]) + enc["be"], 0.0)
    pooled = jnp.mean(h, axis=1)                                   # set pooling
    mean = pooled @ enc["wm"] + enc["bm"]
    logvar = pooled @ enc["wl"] + enc["bl"]
    return mean, logvar


# ----------------------------- full forward ---------------------------------
def discriminator_forward(params, support, values, size, sample_key):
    mean, logvar = encoder_apply(params["enc"], support)
    std = jnp.exp(0.5 * logvar)
    eps = jax.random.normal(sample_key, mean.shape, dtype=mean.dtype)
    latent_sample = mean + std * eps                               # Normal.rsample()
    latent_sample = jnp.repeat(latent_sample, size, axis=0)        # repeat_interleave dim=0
    values_flat = values.reshape(-1, IMG)                          # values.view(-1, 784)
    # TODO(synk): at tiny batches the surrounding encoder/rsample/repeat XLA launches dominate;
    # they could be folded into the same pallas_call, kept in plain JAX here for clarity.
    return verdict_mlp(params["mlp"], values_flat, latent_sample)


if __name__ == "__main__":
    key = jax.random.PRNGKey(0)
    kp, ks, kv, ke = jax.random.split(key, 4)

    B, SIZE = 2, 5
    params = prepare_params(init_params(kp))
    support = jax.random.normal(ks, (B, SIZE, IMG), jnp.float32)        # set of flattened images
    values = jax.random.normal(kv, (B, SIZE, 28, 28), jnp.float32)      # images judged by verdict

    fwd = jax.jit(functools.partial(discriminator_forward, size=SIZE))
    out = fwd(params, support, values, sample_key=ke)
    out = jax.block_until_ready(out)
    assert out.shape == (B * SIZE, 1), out.shape
    assert bool(jnp.all(jnp.isfinite(out)))
    print("KERNEL_OK")
</pallas_src>

<mosaic_0001>
module attributes {stable_mosaic.version = 11 : i64} {
  func.func @verdict_mlp_kernel(%arg0: i32, %arg1: memref<10x784xf32, #tpu.memory_space<vmem>>, %arg2: memref<10x16xf32, #tpu.memory_space<vmem>>, %arg3: memref<784x128xbf16, #tpu.memory_space<vmem>>, %arg4: memref<16x128xbf16, #tpu.memory_space<vmem>>, %arg5: memref<1x128xf32, #tpu.memory_space<vmem>>, %arg6: memref<128x128xbf16, #tpu.memory_space<vmem>>, %arg7: memref<1x128xf32, #tpu.memory_space<vmem>>, %arg8: memref<128x128xbf16, #tpu.memory_space<vmem>>, %arg9: memref<1x128xf32, #tpu.memory_space<vmem>>, %arg10: memref<128x128xbf16, #tpu.memory_space<vmem>>, %arg11: memref<1x128xf32, #tpu.memory_space<vmem>>, %arg12: memref<1x128xf32, #tpu.memory_space<vmem>>, %arg13: memref<1x1xf32, #tpu.memory_space<vmem>>, %arg14: memref<10x1xf32, #tpu.memory_space<vmem>>) attributes {dimension_semantics = [#tpu.dimension_semantics<parallel>], iteration_bounds = array<i64: 1>, scalar_prefetch = 0 : i64, scratch_operands = 0 : i64, tpu.core_type = #tpu.core_type<tc>, window_params = [{transform_indices = @transform_0, window_bounds = array<i64: 10, 784>}, {transform_indices = @transform_1, window_bounds = array<i64: 10, 16>}, {pipeline_mode = #tpu.pipeline_mode<synchronous>, transform_indices = @transform_2, window_bounds = array<i64: 784, 128>}, {pipeline_mode = #tpu.pipeline_mode<synchronous>, transform_indices = @transform_3, window_bounds = array<i64: 16, 128>}, {pipeline_mode = #tpu.pipeline_mode<synchronous>, transform_indices = @transform_4, window_bounds = array<i64: 1, 128>}, {pipeline_mode = #tpu.pipeline_mode<synchronous>, transform_indices = @transform_5, window_bounds = array<i64: 128, 128>}, {pipeline_mode = #tpu.pipeline_mode<synchronous>, transform_indices = @transform_6, window_bounds = array<i64: 1, 128>}, {pipeline_mode = #tpu.pipeline_mode<synchronous>, transform_indices = @transform_7, window_bounds = array<i64: 128, 128>}, {pipeline_mode = #tpu.pipeline_mode<synchronous>, transform_indices = @transform_8, window_bounds = array<i64: 1, 128>}, {pipeline_mode = #tpu.pipeline_mode<synchronous>, transform_indices = @transform_9, window_bounds = array<i64: 128, 128>}, {pipeline_mode = #tpu.pipeline_mode<synchronous>, transform_indices = @transform_10, window_bounds = array<i64: 1, 128>}, {pipeline_mode = #tpu.pipeline_mode<synchronous>, transform_indices = @transform_11, window_bounds = array<i64: 1, 128>}, {pipeline_mode = #tpu.pipeline_mode<synchronous>, transform_indices = @transform_12, window_bounds = array<i64: 1, 1>}, {transform_indices = @transform_13, window_bounds = array<i64: 10, 1>}]} {
    %c0 = arith.constant 0 : index
    %c0_0 = arith.constant 0 : index
    %0 = vector.load %arg1[%c0, %c0_0] : memref<10x784xf32, #tpu.memory_space<vmem>>, vector<10x784xf32>
    %1 = arith.truncf %0 : vector<10x784xf32> to vector<10x784xbf16>
    %c0_1 = arith.constant 0 : index
    %c0_2 = arith.constant 0 : index
    %2 = vector.load %arg2[%c0_1, %c0_2] : memref<10x16xf32, #tpu.memory_space<vmem>>, vector<10x16xf32>
    %3 = arith.truncf %2 : vector<10x16xf32> to vector<10x16xbf16>
    %c0_3 = arith.constant 0 : index
    %c0_4 = arith.constant 0 : index
    %4 = vector.load %arg3[%c0_3, %c0_4] : memref<784x128xbf16, #tpu.memory_space<vmem>>, vector<784x128xbf16>
    %cst = arith.constant dense<0.000000e+00> : vector<10x128xf32>
    %5 = tpu.matmul %1, %4, %cst {dimension_numbers = #tpu.dot_dimension_numbers<[1], [0], [0], [1], [0, 0, 1, 1], [], []>} : vector<10x784xbf16>, vector<784x128xbf16>, vector<10x128xf32> -> vector<10x128xf32>
    %c0_5 = arith.constant 0 : index
    %c0_6 = arith.constant 0 : index
    %6 = vector.load %arg4[%c0_5, %c0_6] : memref<16x128xbf16, #tpu.memory_space<vmem>>, vector<16x128xbf16>
    %cst_7 = arith.constant dense<0.000000e+00> : vector<10x128xf32>
    %7 = tpu.matmul %3, %6, %cst_7 {dimension_numbers = #tpu.dot_dimension_numbers<[1], [0], [0], [1], [0, 0, 1, 1], [], []>} : vector<10x16xbf16>, vector<16x128xbf16>, vector<10x128xf32> -> vector<10x128xf32>
    %8 = arith.addf %5, %7 : vector<10x128xf32>
    %c0_8 = arith.constant 0 : index
    %c0_9 = arith.constant 0 : index
    %9 = vector.load %arg5[%c0_8, %c0_9] : memref<1x128xf32, #tpu.memory_space<vmem>>, vector<1x128xf32>
    %10 = vector.broadcast %9 : vector<1x128xf32> to vector<10x128xf32>
    %11 = arith.addf %8, %10 : vector<10x128xf32>
    %cst_10 = arith.constant 0.000000e+00 : f32
    %12 = vector.broadcast %cst_10 : f32 to vector<10x128xf32>
    %13 = arith.cmpf oge, %11, %12 : vector<10x128xf32>
    %cst_11 = arith.constant 0.00999999977 : f32
    %14 = vector.broadcast %cst_11 : f32 to vector<10x128xf32>
    %15 = arith.mulf %14, %11 : vector<10x128xf32>
    %16 = arith.select %13, %11, %15 : vector<10x128xi1>, vector<10x128xf32>
    %17 = arith.truncf %16 : vector<10x128xf32> to vector<10x128xbf16>
    %c0_12 = arith.constant 0 : index
    %c0_13 = arith.constant 0 : index
    %18 = vector.load %arg6[%c0_12, %c0_13] : memref<128x128xbf16, #tpu.memory_space<vmem>>, vector<128x128xbf16>
    %cst_14 = arith.constant dense<0.000000e+00> : vector<10x128xf32>
    %19 = tpu.matmul %17, %18, %cst_14 {dimension_numbers = #tpu.dot_dimension_numbers<[1], [0], [0], [1], [0, 0, 1, 1], [], []>} : vector<10x128xbf16>, vector<128x128xbf16>, vector<10x128xf32> -> vector<10x128xf32>
    %c0_15 = arith.constant 0 : index
    %c0_16 = arith.constant 0 : index
    %20 = vector.load %arg7[%c0_15, %c0_16] : memref<1x128xf32, #tpu.memory_space<vmem>>, vector<1x128xf32>
    %21 = vector.broadcast %20 : vector<1x128xf32> to vector<10x128xf32>
    %22 = arith.addf %19, %21 : vector<10x128xf32>
    %cst_17 = arith.constant 0.000000e+00 : f32
    %23 = vector.broadcast %cst_17 : f32 to vector<10x128xf32>
    %24 = arith.cmpf oge, %22, %23 : vector<10x128xf32>
    %cst_18 = arith.constant 0.00999999977 : f32
    %25 = vector.broadcast %cst_18 : f32 to vector<10x128xf32>
    %26 = arith.mulf %25, %22 : vector<10x128xf32>
    %27 = arith.select %24, %22, %26 : vector<10x128xi1>, vector<10x128xf32>
    %28 = arith.truncf %27 : vector<10x128xf32> to vector<10x128xbf16>
    %c0_19 = arith.constant 0 : index
    %c0_20 = arith.constant 0 : index
    %29 = vector.load %arg8[%c0_19, %c0_20] : memref<128x128xbf16, #tpu.memory_space<vmem>>, vector<128x128xbf16>
    %cst_21 = arith.constant dense<0.000000e+00> : vector<10x128xf32>
    %30 = tpu.matmul %28, %29, %cst_21 {dimension_numbers = #tpu.dot_dimension_numbers<[1], [0], [0], [1], [0, 0, 1, 1], [], []>} : vector<10x128xbf16>, vector<128x128xbf16>, vector<10x128xf32> -> vector<10x128xf32>
    %c0_22 = arith.constant 0 : index
    %c0_23 = arith.constant 0 : index
    %31 = vector.load %arg9[%c0_22, %c0_23] : memref<1x128xf32, #tpu.memory_space<vmem>>, vector<1x128xf32>
    %32 = vector.broadcast %31 : vector<1x128xf32> to vector<10x128xf32>
    %33 = arith.addf %30, %32 : vector<10x128xf32>
    %cst_24 = arith.constant 0.000000e+00 : f32
    %34 = vector.broadcast %cst_24 : f32 to vector<10x128xf32>
    %35 = arith.cmpf oge, %33, %34 : vector<10x128xf32>
    %cst_25 = arith.constant 0.00999999977 : f32
    %36 = vector.broadcast %cst_25 : f32 to vector<10x128xf32>
    %37 = arith.mulf %36, %33 : vector<10x128xf32>
    %38 = arith.select %35, %33, %37 : vector<10x128xi1>, vector<10x128xf32>
    %39 = arith.truncf %38 : vector<10x128xf32> to vector<10x128xbf16>
    %c0_26 = arith.constant 0 : index
    %c0_27 = arith.constant 0 : index
    %40 = vector.load %arg10[%c0_26, %c0_27] : memref<128x128xbf16, #tpu.memory_space<vmem>>, vector<128x128xbf16>
    %cst_28 = arith.constant dense<0.000000e+00> : vector<10x128xf32>
    %41 = tpu.matmul %39, %40, %cst_28 {dimension_numbers = #tpu.dot_dimension_numbers<[1], [0], [0], [1], [0, 0, 1, 1], [], []>} : vector<10x128xbf16>, vector<128x128xbf16>, vector<10x128xf32> -> vector<10x128xf32>
    %c0_29 = arith.constant 0 : index
    %c0_30 = arith.constant 0 : index
    %42 = vector.load %arg11[%c0_29, %c0_30] : memref<1x128xf32, #tpu.memory_space<vmem>>, vector<1x128xf32>
    %43 = vector.broadcast %42 : vector<1x128xf32> to vector<10x128xf32>
    %44 = arith.addf %41, %43 : vector<10x128xf32>
    %cst_31 = arith.constant 0.000000e+00 : f32
    %45 = vector.broadcast %cst_31 : f32 to vector<10x128xf32>
    %46 = arith.cmpf oge, %44, %45 : vector<10x128xf32>
    %cst_32 = arith.constant 0.00999999977 : f32
    %47 = vector.broadcast %cst_32 : f32 to vector<10x128xf32>
    %48 = arith.mulf %47, %44 : vector<10x128xf32>
    %49 = arith.select %46, %44, %48 : vector<10x128xi1>, vector<10x128xf32>
    %c0_33 = arith.constant 0 : index
    %c0_34 = arith.constant 0 : index
    %50 = vector.load %arg12[%c0_33, %c0_34] : memref<1x128xf32, #tpu.memory_space<vmem>>, vector<1x128xf32>
    %51 = vector.broadcast %50 : vector<1x128xf32> to vector<10x128xf32>
    %52 = arith.mulf %49, %51 : vector<10x128xf32>
    %cst_35 = arith.constant dense<0.000000e+00> : vector<10xf32>
    %53 = vector.multi_reduction <add>, %52, %cst_35 [1] : vector<10x128xf32> to vector<10xf32>
    %54 = vector.shape_cast %53 : vector<10xf32> to vector<10x1xf32>
    %c0_36 = arith.constant 0 : index
    %c0_37 = arith.constant 0 : index
    %55 = vector.load %arg13[%c0_36, %c0_37] : memref<1x1xf32, #tpu.memory_space<vmem>>, vector<1x1xf32>
    %56 = vector.broadcast %55 : vector<1x1xf32> to vector<10x1xf32>
    %57 = arith.addf %54, %56 : vector<10x1xf32>
    %c0_38 = arith.constant 0 : index
    %c0_39 = arith.constant 0 : index
    %58 = vector.load %arg14[%c0_38, %c0_39] : memref<10x1xf32, #tpu.memory_space<vmem>>, vector<10x1xf32>
    tpu.vector_store %arg14[%c0_38, %c0_39], %57 {strides = array<i32>} : memref<10x1xf32, #tpu.memory_space<vmem>>, vector<10x1xf32>,
    return
  }
  func.func @transform_0(%arg0: i32) -> (i32, i32) {
    %c0_i32 = arith.constant 0 : i32
    %c0_i32_0 = arith.constant 0 : i32
    return %arg0, %c0_i32 : i32, i32
  }
  func.func @transform_1(%arg0: i32) -> (i32, i32) {
    %c0_i32 = arith.constant 0 : i32
    %c0_i32_0 = arith.constant 0 : i32
    return %arg0, %c0_i32 : i32, i32
  }
  func.func @transform_2(%arg0: i32) -> (i32, i32) {
    %c0_i32 = arith.constant 0 : i32
    %c0_i32_0 = arith.constant 0 : i32
    %c0_i32_1 = arith.constant 0 : i32
    return %c0_i32, %c0_i32_0 : i32, i32
  }
  func.func @transform_3(%arg0: i32) -> (i32, i32) {
    %c0_i32 = arith.constant 0 : i32
    %c0_i32_0 = arith.constant 0 : i32
    %c0_i32_1 = arith.constant 0 : i32
    return %c0_i32, %c0_i32_0 : i32, i32
  }
  func.func @transform_4(%arg0: i32) -> (i32, i32) {
    %c0_i32 = arith.constant 0 : i32
    %c0_i32_0 = arith.constant 0 : i32
    %c0_i32_1 = arith.constant 0 : i32
    return %c0_i32, %c0_i32_0 : i32, i32
  }
  func.func @transform_5(%arg0: i32) -> (i32, i32) {
    %c0_i32 = arith.constant 0 : i32
    %c0_i32_0 = arith.constant 0 : i32
    %c0_i32_1 = arith.constant 0 : i32
    return %c0_i32, %c0_i32_0 : i32, i32
  }
  func.func @transform_6(%arg0: i32) -> (i32, i32) {
    %c0_i32 = arith.constant 0 : i32
    %c0_i32_0 = arith.constant 0 : i32
    %c0_i32_1 = arith.constant 0 : i32
    return %c0_i32, %c0_i32_0 : i32, i32
  }
  func.func @transform_7(%arg0: i32) -> (i32, i32) {
    %c0_i32 = arith.constant 0 : i32
    %c0_i32_0 = arith.constant 0 : i32
    %c0_i32_1 = arith.constant 0 : i32
    return %c0_i32, %c0_i32_0 : i32, i32
  }
  func.func @transform_8(%arg0: i32) -> (i32, i32) {
    %c0_i32 = arith.constant 0 : i32
    %c0_i32_0 = arith.constant 0 : i32
    %c0_i32_1 = arith.constant 0 : i32
    return %c0_i32, %c0_i32_0 : i32, i32
  }
  func.func @transform_9(%arg0: i32) -> (i32, i32) {
    %c0_i32 = arith.constant 0 : i32
    %c0_i32_0 = arith.constant 0 : i32
    %c0_i32_1 = arith.constant 0 : i32
    return %c0_i32, %c0_i32_0 : i32, i32
  }
  func.func @transform_10(%arg0: i32) -> (i32, i32) {
    %c0_i32 = arith.constant 0 : i32
    %c0_i32_0 = arith.constant 0 : i32
    %c0_i32_1 = arith.constant 0 : i32
    return %c0_i32, %c0_i32_0 : i32, i32
  }
  func.func @transform_11(%arg0: i32) -> (i32, i32) {
    %c0_i32 = arith.constant 0 : i32
    %c0_i32_0 = arith.constant 0 : i32
    %c0_i32_1 = arith.constant 0 : i32
    return %c0_i32, %c0_i32_0 : i32, i32
  }
  func.func @transform_12(%arg0: i32) -> (i32, i32) {
    %c0_i32 = arith.constant 0 : i32
    %c0_i32_0 = arith.constant 0 : i32
    %c0_i32_1 = arith.constant 0 : i32
    return %c0_i32, %c0_i32_0 : i32, i32
  }
  func.func @transform_13(%arg0: i32) -> (i32, i32) {
    %c0_i32 = arith.constant 0 : i32
    %c0_i32_0 = arith.constant 0 : i32
    return %arg0, %c0_i32 : i32, i32
  }
}

</mosaic_0001>

<llo_original>
// kernel: discriminator_forward.1
$region0: #{discriminator_forward.1}
  #allocation0 [shape = 'u32[]', space=smem, size = 0x4, offset = 0x4, fixed_abs, tag = 'smem constant byte address 0x4 - core index']
  #allocation1 [shape = 'u32[72,128]{1,0:T(1,128)}', space=vmem, size = 0x9000, scoped, tag = 'internal scratch']
  #allocation2 [shape = 'f32[1,1]{1,0:T(1,128)S(1)}', space=vmem, size = 0x200, scoped, tag = 'scoped memory for discriminator_forward.1']
  %s0 = inlined_call_operand.vmem [shape: f32[10,784], index: 0, kind: input, shape index: {}]
  %s1 = inlined_call_operand.vmem [shape: f32[10,16], index: 1, kind: input, shape index: {}]
  %s2 = inlined_call_operand.vmem [shape: bf16[784,128], index: 2, kind: input, shape index: {}]
  %s3 = inlined_call_operand.vmem [shape: bf16[16,128], index: 3, kind: input, shape index: {}]
  %s4 = inlined_call_operand.vmem [shape: f32[1,128], index: 4, kind: input, shape index: {}]
  %s5 = inlined_call_operand.vmem [shape: bf16[128,128], index: 5, kind: input, shape index: {}]
  %s6 = inlined_call_operand.vmem [shape: f32[1,128], index: 6, kind: input, shape index: {}]
  %s7 = inlined_call_operand.vmem [shape: bf16[128,128], index: 7, kind: input, shape index: {}]
  %s8 = inlined_call_operand.vmem [shape: f32[1,128], index: 8, kind: input, shape index: {}]
  %s9 = inlined_call_operand.vmem [shape: bf16[128,128], index: 9, kind: input, shape index: {}]
  %s10 = inlined_call_operand.vmem [shape: f32[1,128], index: 10, kind: input, shape index: {}]
  %s11 = inlined_call_operand.vmem [shape: f32[1,128], index: 11, kind: input, shape index: {}]
  %s12 = inlined_call_operand.<no memory space> [shape: f32[1,1], index: 12, kind: input, shape index: {}]
  %s13 = inlined_call_operand.vmem [shape: f32[10,1], index: 13, kind: output, shape index: {}]
  %s14 = sld [smem:[#allocation0]]
  $region62: #{discriminator_forward.1} parent=0
    _
  %s16 = ssub.s32 1, %s14
  %s17 = scalar_select 0, %s16, %s14
  %v18 = vstv %s12
  %19 = vst [vmem:[#allocation2] sm:$0x1] %v18
  // Predicated region
  $region2: #{discriminator_forward.1} parent=0 // pred_check
    _
  $region3: #{discriminator_forward.1} parent=0 // pred_check_branch
    %21 = sbr.rel (0) target = $region5
  $region4: #{discriminator_forward.1} parent=0 // pred_region
    _
  $region5: #{discriminator_forward.1} parent=0 // pred_fallthru
    _
  // Predicated region
  $region6: #{discriminator_forward.1} parent=0 // pred_check
    _
  $region7: #{discriminator_forward.1} parent=0 // pred_check_branch
    %23 = sbr.rel (0) target = $region9
  $region8: #{discriminator_forward.1} parent=0 // pred_region
    _
  $region9: #{discriminator_forward.1} parent=0 // pred_fallthru
    _
  // Predicated region
  $region10: #{discriminator_forward.1} parent=0 // pred_check
    _
  $region11: #{discriminator_forward.1} parent=0 // pred_check_branch
    %25 = sbr.rel (0) target = $region13
  $region12: #{discriminator_forward.1} parent=0 // pred_region
    _
  $region13: #{discriminator_forward.1} parent=0 // pred_fallthru
    _
  // Predicated region
  $region14: #{discriminator_forward.1} parent=0 // pred_check
    _
  $region15: #{discriminator_forward.1} parent=0 // pred_check_branch
    %27 = sbr.rel (0) target = $region17
  $region16: #{discriminator_forward.1} parent=0 // pred_region
    _
  $region17: #{discriminator_forward.1} parent=0 // pred_fallthru
    _
  // Predicated region
  $region18: #{discriminator_forward.1} parent=0 // pred_check
    _
  $region19: #{discriminator_forward.1} parent=0 // pred_check_branch
    %29 = sbr.rel (0) target = $region21
  $region20: #{discriminator_forward.1} parent=0 // pred_region
    _
  $region21: #{discriminator_forward.1} parent=0 // pred_fallthru
    _
  // Predicated region
  $region22: #{discriminator_forward.1} parent=0 // pred_check
    _
  $region23: #{discriminator_forward.1} parent=0 // pred_check_branch
    %31 = sbr.rel (0) target = $region25
  $region24: #{discriminator_forward.1} parent=0 // pred_region
    _
  $region25: #{discriminator_forward.1} parent=0 // pred_fallthru
    _
  // Predicated region
  $region26: #{discriminator_forward.1} parent=0 // pred_check
    _
  $region27: #{discriminator_forward.1} parent=0 // pred_check_branch
    %33 = sbr.rel (0) target = $region29
  $region28: #{discriminator_forward.1} parent=0 // pred_region
    _
  $region29: #{discriminator_forward.1} parent=0 // pred_fallthru
    _
  // Predicated region
  $region30: #{discriminator_forward.1} parent=0 // pred_check
    _
  $region31: #{discriminator_forward.1} parent=0 // pred_check_branch
    %35 = sbr.rel (0) target = $region33
  $region32: #{discriminator_forward.1} parent=0 // pred_region
    _
  $region33: #{discriminator_forward.1} parent=0 // pred_fallthru
    _
  // Predicated region
  $region34: #{discriminator_forward.1} parent=0 // pred_check
    _
  $region35: #{discriminator_forward.1} parent=0 // pred_check_branch
    %37 = sbr.rel (0) target = $region37
  $region36: #{discriminator_forward.1} parent=0 // pred_region
    _
  $region37: #{discriminator_forward.1} parent=0 // pred_fallthru
    _
  // Predicated region
  $region38: #{discriminator_forward.1} parent=0 // pred_check
    _
  $region39: #{discriminator_forward.1} parent=0 // pred_check_branch
    %39 = sbr.rel (0) target = $region41
  $region40: #{discriminator_forward.1} parent=0 // pred_region
    _
  $region41: #{discriminator_forward.1} parent=0 // pred_fallthru
    _
  // Predicated region
  $region42: #{discriminator_forward.1} parent=0 // pred_check
    _
  $region43: #{discriminator_forward.1} parent=0 // pred_check_branch
    %41 = sbr.rel (0) target = $region45
  $region44: #{discriminator_forward.1} parent=0 // pred_region
    _
  $region45: #{discriminator_forward.1} parent=0 // pred_fallthru
    _
  // Predicated region
  $region46: #{discriminator_forward.1} parent=0 // pred_check
    _
  $region47: #{discriminator_forward.1} parent=0 // pred_check_branch
    %43 = sbr.rel (0) target = $region49
  $region48: #{discriminator_forward.1} parent=0 // pred_region
    _
  $region49: #{discriminator_forward.1} parent=0 // pred_fallthru
    _
  // Predicated region
  $region50: #{discriminator_forward.1} parent=0 // pred_check
    _
  $region51: #{discriminator_forward.1} parent=0 // pred_check_branch
    %45 = sbr.rel (0) target = $region53
  $region52: #{discriminator_forward.1} parent=0 // pred_region
    _
  $region53: #{discriminator_forward.1} parent=0 // pred_fallthru
    _
  %v47 = vld [vmem:[%s0] sm:$0xff]
  %v48 = vld [vmem:[%s0 + $0x8] sm:$0xff]
  %v49 = vld [vmem:[%s0 + $0x10] sm:$0xff]
  %v50 = vld [vmem:[%s0 + $0x18] sm:$0xff]
  %v51 = vld [vmem:[%s0 + $0x20] sm:$0xff]
  %v52 = vld [vmem:[%s0 + $0x28] sm:$0xff]
  %v53 = vld [vmem:[%s0 + $0x30] sm:$0xff]
  %v54 = vld [vmem:[%s0 + $0x38] sm:$0x3]
  %v55 = vld [vmem:[%s0 + $0x40] sm:$0x3]
  %v56 = vld [vmem:[%s0 + $0x48] sm:$0x3]
  %v57 = vld [vmem:[%s0 + $0x50] sm:$0x3]
  %v58 = vld [vmem:[%s0 + $0x58] sm:$0x3]
  %v59 = vld [vmem:[%s0 + $0x60] sm:$0x3]
  %v60 = vld [vmem:[%s0 + $0x68] sm:$0x3]
  %v61 = vpack.c.bf16 %v54, %v47
  %v62 = vpack.c.bf16 %v55, %v48
  %v63 = vpack.c.bf16 %v56, %v49
  %v64 = vpack.c.bf16 %v57, %v50
  %v65 = vpack.c.bf16 %v58, %v51
  %v66 = vpack.c.bf16 %v59, %v52
  %v67 = vpack.c.bf16 %v60, %v53
  %v68 = vld [vmem:[%s1] sm:$0xff]
  %v69 = vld [vmem:[%s1 + $0x8] sm:$0x3]
  %v70 = vpack.c.bf16 %v69, %v68
  %v71 = vld [vmem:[%s2] sm:$0xf]
  %v72 = vld [vmem:[%s2 + $0x4] sm:$0xf]
  %v73 = vld [vmem:[%s2 + $0x8] sm:$0xf]
  %v74 = vld [vmem:[%s2 + $0xc] sm:$0xf]
  %v75 = vld [vmem:[%s2 + $0x10] sm:$0xf]
  %v76 = vld [vmem:[%s2 + $0x14] sm:$0xf]
  %v77 = vld [vmem:[%s2 + $0x18] sm:$0xf]
  %v78 = vld [vmem:[%s2 + $0x1c] sm:$0xf]
  %v79 = vld [vmem:[%s2 + $0x20] sm:$0xf]
  %v80 = vld [vmem:[%s2 + $0x24] sm:$0xf]
  %v81 = vld [vmem:[%s2 + $0x28] sm:$0xf]
  %v82 = vld [vmem:[%s2 + $0x2c] sm:$0xf]
  %v83 = vld [vmem:[%s2 + $0x30] sm:$0xf]
  %v84 = vld [vmem:[%s2 + $0x34] sm:$0xf]
  %v85 = vld [vmem:[%s2 + $0x38] sm:$0xf]
  %v86 = vld [vmem:[%s2 + $0x3c] sm:$0xf]
  %v87 = vld [vmem:[%s2 + $0x40] sm:$0xf]
  %v88 = vld [vmem:[%s2 + $0x44] sm:$0xf]
  %v89 = vld [vmem:[%s2 + $0x48] sm:$0xf]
  %v90 = vld [vmem:[%s2 + $0x4c] sm:$0xf]
  %v91 = vld [vmem:[%s2 + $0x50] sm:$0xf]
  %v92 = vld [vmem:[%s2 + $0x54] sm:$0xf]
  %v93 = vld [vmem:[%s2 + $0x58] sm:$0xf]
  %v94 = vld [vmem:[%s2 + $0x5c] sm:$0xf]
  %v95 = vld [vmem:[%s2 + $0x60] sm:$0xf]
  %v96 = vld [vmem:[%s2 + $0x64] sm:$0xf]
  %v97 = vld [vmem:[%s2 + $0x68] sm:$0xf]
  %v98 = vld [vmem:[%s2 + $0x6c] sm:$0xf]
  %v99 = vld [vmem:[%s2 + $0x70] sm:$0xf]
  %v100 = vld [vmem:[%s2 + $0x74] sm:$0xf]
  %v101 = vld [vmem:[%s2 + $0x78] sm:$0xf]
  %v102 = vld [vmem:[%s2 + $0x7c] sm:$0xf]
  %v103 = vld [vmem:[%s2 + $0x80] sm:$0xf]
  %v104 = vld [vmem:[%s2 + $0x84] sm:$0xf]
  %v105 = vld [vmem:[%s2 + $0x88] sm:$0xf]
  %v106 = vld [vmem:[%s2 + $0x8c] sm:$0xf]
  %v107 = vld [vmem:[%s2 + $0x90] sm:$0xf]
  %v108 = vld [vmem:[%s2 + $0x94] sm:$0xf]
  %v109 = vld [vmem:[%s2 + $0x98] sm:$0xf]
  %v110 = vld [vmem:[%s2 + $0x9c] sm:$0xf]
  %v111 = vld [vmem:[%s2 + $0xa0] sm:$0xf]
  %v112 = vld [vmem:[%s2 + $0xa4] sm:$0xf]
  %v113 = vld [vmem:[%s2 + $0xa8] sm:$0xf]
  %v114 = vld [vmem:[%s2 + $0xac] sm:$0xf]
  %v115 = vld [vmem:[%s2 + $0xb0] sm:$0xf]
  %v116 = vld [vmem:[%s2 + $0xb4] sm:$0xf]
  %v117 = vld [vmem:[%s2 + $0xb8] sm:$0xf]
  %v118 = vld [vmem:[%s2 + $0xbc] sm:$0xf]
  %v119 = vld [vmem:[%s2 + $0xc0] sm:$0xf]
  %v120 = vld [vmem:[%s2 + $0xc4] sm:$0xf]
  %v121 = vld [vmem:[%s2 + $0xc8] sm:$0xf]
  %v122 = vld [vmem:[%s2 + $0xcc] sm:$0xf]
  %v123 = vld [vmem:[%s2 + $0xd0] sm:$0xf]
  %v124 = vld [vmem:[%s2 + $0xd4] sm:$0xf]
  %v125 = vld [vmem:[%s2 + $0xd8] sm:$0xf]
  %v126 = vld [vmem:[%s2 + $0xdc] sm:$0xf]
  %v127 = vld [vmem:[%s2 + $0xe0] sm:$0xf]
  %v128 = vld [vmem:[%s2 + $0xe4] sm:$0xf]
  %v129 = vld [vmem:[%s2 + $0xe8] sm:$0xf]
  %v130 = vld [vmem:[%s2 + $0xec] sm:$0xf]
  %v131 = vld [vmem:[%s2 + $0xf0] sm:$0xf]
  %v132 = vld [vmem:[%s2 + $0xf4] sm:$0xf]
  %v133 = vld [vmem:[%s2 + $0xf8] sm:$0xf]
  %v134 = vld [vmem:[%s2 + $0xfc] sm:$0xf]
  %v135 = vld [vmem:[%s2 + $0x100] sm:$0xf]
  %v136 = vld [vmem:[%s2 + $0x104] sm:$0xf]
  %v137 = vld [vmem:[%s2 + $0x108] sm:$0xf]
  %v138 = vld [vmem:[%s2 + $0x10c] sm:$0xf]
  %v139 = vld [vmem:[%s2 + $0x110] sm:$0xf]
  %v140 = vld [vmem:[%s2 + $0x114] sm:$0xf]
  %v141 = vld [vmem:[%s2 + $0x118] sm:$0xf]
  %v142 = vld [vmem:[%s2 + $0x11c] sm:$0xf]
  %v143 = vld [vmem:[%s2 + $0x120] sm:$0xf]
  %v144 = vld [vmem:[%s2 + $0x124] sm:$0xf]
  %v145 = vld [vmem:[%s2 + $0x128] sm:$0xf]
  %v146 = vld [vmem:[%s2 + $0x12c] sm:$0xf]
  %v147 = vld [vmem:[%s2 + $0x130] sm:$0xf]
  %v148 = vld [vmem:[%s2 + $0x134] sm:$0xf]
  %v149 = vld [vmem:[%s2 + $0x138] sm:$0xf]
  %v150 = vld [vmem:[%s2 + $0x13c] sm:$0xf]
  %v151 = vld [vmem:[%s2 + $0x140] sm:$0xf]
  %v152 = vld [vmem:[%s2 + $0x144] sm:$0xf]
  %v153 = vld [vmem:[%s2 + $0x148] sm:$0xf]
  %v154 = vld [vmem:[%s2 + $0x14c] sm:$0xf]
  %v155 = vld [vmem:[%s2 + $0x150] sm:$0xf]
  %v156 = vld [vmem:[%s2 + $0x154] sm:$0xf]
  %v157 = vld [vmem:[%s2 + $0x158] sm:$0xf]
  %v158 = vld [vmem:[%s2 + $0x15c] sm:$0xf]
  %v159 = vld [vmem:[%s2 + $0x160] sm:$0xf]
  %v160 = vld [vmem:[%s2 + $0x164] sm:$0xf]
  %v161 = vld [vmem:[%s2 + $0x168] sm:$0xf]
  %v162 = vld [vmem:[%s2 + $0x16c] sm:$0xf]
  %v163 = vld [vmem:[%s2 + $0x170] sm:$0xf]
  %v164 = vld [vmem:[%s2 + $0x174] sm:$0xf]
  %v165 = vld [vmem:[%s2 + $0x178] sm:$0xf]
  %v166 = vld [vmem:[%s2 + $0x17c] sm:$0xf]
  %v167 = vld [vmem:[%s2 + $0x180] sm:$0xf]
  %v168 = vld [vmem:[%s2 + $0x184] sm:$0xf]
  %v169 = vld [vmem:[%s3] sm:$0xf]
  %v170 = vld [vmem:[%s3 + $0x4] sm:$0xf]
  %v173 = vunpack.c.l.b16 %v169
  %v174 = vunpack.c.l.b16 %v170
  %v175 = vpack.c.b16 %v174, %v173
  %vm177 = vcmask 130048
  %v179 = vsel %vm177, %v70, 0
  %181 = vmatpush.bf16.msra.mxu0 0
  %182 = vmatpush.bf16.msra.mxu0 0
  %183 = vmatpush.bf16.msra.mxu0 0
  %184 = vmatpush.bf16.msra.mxu0 0
  %185 = vmatpush.bf16.msra.mxu0 0
  %186 = vmatpush.bf16.msra.mxu0 0
  %187 = vmatpush.bf16.msra.mxu0 0
  %188 = vmatpush.bf16.msra.mxu0 %v175
  %189 = vmatmul.bf16.gmra.mxu0 %v179
  %v190 = vpop.f32.mrf.mxu0
  %v191 = vadd.f32 0.0, %v190
  %v192 = vpop.f32.mrf.mxu0
  %v193 = vadd.f32 0.0, %v192
  %194 = vdwg.mxu0
  %v293 = vunpack.c.l.b16 %v71
  %v294 = vunpack.c.l.b16 %v72
  %v295 = vunpack.c.l.b16 %v73
  %v296 = vunpack.c.l.b16 %v74
  %v297 = vunpack.c.l.b16 %v75
  %v298 = vunpack.c.l.b16 %v76
  %v299 = vunpack.c.l.b16 %v77
  %v300 = vunpack.c.l.b16 %v78
  %v301 = vunpack.c.l.b16 %v79
  %v302 = vunpack.c.l.b16 %v80
  %v303 = vunpack.c.l.b16 %v81
  %v304 = vunpack.c.l.b16 %v82
  %v305 = vunpack.c.l.b16 %v83
  %v306 = vunpack.c.l.b16 %v84
  %v307 = vunpack.c.l.b16 %v85
  %v308 = vunpack.c.l.b16 %v86
  %v309 = vunpack.c.l.b16 %v87
  %v310 = vunpack.c.l.b16 %v88
  %v311 = vunpack.c.l.b16 %v89
  %v312 = vunpack.c.l.b16 %v90
  %v313 = vunpack.c.l.b16 %v91
  %v314 = vunpack.c.l.b16 %v92
  %v315 = vunpack.c.l.b16 %v93
  %v316 = vunpack.c.l.b16 %v94
  %v317 = vunpack.c.l.b16 %v95
  %v318 = vunpack.c.l.b16 %v96
  %v319 = vunpack.c.l.b16 %v97
  %v320 = vunpack.c.l.b16 %v98
  %v321 = vunpack.c.l.b16 %v99
  %v322 = vunpack.c.l.b16 %v100
  %v323 = vunpack.c.l.b16 %v101
  %v324 = vunpack.c.l.b16 %v102
  %v325 = vunpack.c.l.b16 %v103
  %v326 = vunpack.c.l.b16 %v104
  %v327 = vunpack.c.l.b16 %v105
  %v328 = vunpack.c.l.b16 %v106
  %v329 = vunpack.c.l.b16 %v107
  %v330 = vunpack.c.l.b16 %v108
  %v331 = vunpack.c.l.b16 %v109
  %v332 = vunpack.c.l.b16 %v110
  %v333 = vunpack.c.l.b16 %v111
  %v334 = vunpack.c.l.b16 %v112
  %v335 = vunpack.c.l.b16 %v113
  %v336 = vunpack.c.l.b16 %v114
  %v337 = vunpack.c.l.b16 %v115
  %v338 = vunpack.c.l.b16 %v116
  %v339 = vunpack.c.l.b16 %v117
  %v340 = vunpack.c.l.b16 %v118
  %v341 = vunpack.c.l.b16 %v119
  %v342 = vunpack.c.l.b16 %v120
  %v343 = vunpack.c.l.b16 %v121
  %v344 = vunpack.c.l.b16 %v122
  %v345 = vunpack.c.l.b16 %v123
  %v346 = vunpack.c.l.b16 %v124
  %v347 = vunpack.c.l.b16 %v125
  %v348 = vunpack.c.l.b16 %v126
  %v349 = vunpack.c.l.b16 %v127
  %v350 = vunpack.c.l.b16 %v128
  %v351 = vunpack.c.l.b16 %v129
  %v352 = vunpack.c.l.b16 %v130
  %v353 = vunpack.c.l.b16 %v131
  %v354 = vunpack.c.l.b16 %v132
  %v355 = vunpack.c.l.b16 %v133
  %v356 = vunpack.c.l.b16 %v134
  %v357 = vunpack.c.l.b16 %v135
  %v358 = vunpack.c.l.b16 %v136
  %v359 = vunpack.c.l.b16 %v137
  %v360 = vunpack.c.l.b16 %v138
  %v361 = vunpack.c.l.b16 %v139
  %v362 = vunpack.c.l.b16 %v140
  %v363 = vunpack.c.l.b16 %v141
  %v364 = vunpack.c.l.b16 %v142
  %v365 = vunpack.c.l.b16 %v143
  %v366 = vunpack.c.l.b16 %v144
  %v367 = vunpack.c.l.b16 %v145
  %v368 = vunpack.c.l.b16 %v146
  %v369 = vunpack.c.l.b16 %v147
  %v370 = vunpack.c.l.b16 %v148
  %v371 = vunpack.c.l.b16 %v149
  %v372 = vunpack.c.l.b16 %v150
  %v373 = vunpack.c.l.b16 %v151
  %v374 = vunpack.c.l.b16 %v152
  %v375 = vunpack.c.l.b16 %v153
  %v376 = vunpack.c.l.b16 %v154
  %v377 = vunpack.c.l.b16 %v155
  %v378 = vunpack.c.l.b16 %v156
  %v379 = vunpack.c.l.b16 %v157
  %v380 = vunpack.c.l.b16 %v158
  %v381 = vunpack.c.l.b16 %v159
  %v382 = vunpack.c.l.b16 %v160
  %v383 = vunpack.c.l.b16 %v161
  %v384 = vunpack.c.l.b16 %v162
  %v385 = vunpack.c.l.b16 %v163
  %v386 = vunpack.c.l.b16 %v164
  %v387 = vunpack.c.l.b16 %v165
  %v388 = vunpack.c.l.b16 %v166
  %v389 = vunpack.c.l.b16 %v167
  %v390 = vunpack.c.l.b16 %v168
  %v391 = vpack.c.b16 %v294, %v293
  %v392 = vpack.c.b16 %v296, %v295
  %v393 = vpack.c.b16 %v298, %v297
  %v394 = vpack.c.b16 %v300, %v299
  %v395 = vpack.c.b16 %v302, %v301
  %v396 = vpack.c.b16 %v304, %v303
  %v397 = vpack.c.b16 %v306, %v305
  %v398 = vpack.c.b16 %v308, %v307
  %v399 = vpack.c.b16 %v310, %v309
  %v400 = vpack.c.b16 %v312, %v311
  %v401 = vpack.c.b16 %v314, %v313
  %v402 = vpack.c.b16 %v316, %v315
  %v403 = vpack.c.b16 %v318, %v317
  %v404 = vpack.c.b16 %v320, %v319
  %v405 = vpack.c.b16 %v322, %v321
  %v406 = vpack.c.b16 %v324, %v323
  %v407 = vpack.c.b16 %v326, %v325
  %v408 = vpack.c.b16 %v328, %v327
  %v409 = vpack.c.b16 %v330, %v329
  %v410 = vpack.c.b16 %v332, %v331
  %v411 = vpack.c.b16 %v334, %v333
  %v412 = vpack.c.b16 %v336, %v335
  %v413 = vpack.c.b16 %v338, %v337
  %v414 = vpack.c.b16 %v340, %v339
  %v415 = vpack.c.b16 %v342, %v341
  %v416 = vpack.c.b16 %v344, %v343
  %v417 = vpack.c.b16 %v346, %v345
  %v418 = vpack.c.b16 %v348, %v347
  %v419 = vpack.c.b16 %v350, %v349
  %v420 = vpack.c.b16 %v352, %v351
  %v421 = vpack.c.b16 %v354, %v353
  %v422 = vpack.c.b16 %v356, %v355
  %v423 = vpack.c.b16 %v358, %v357
  %v424 = vpack.c.b16 %v360, %v359
  %v425 = vpack.c.b16 %v362, %v361
  %v426 = vpack.c.b16 %v364, %v363
  %v427 = vpack.c.b16 %v366, %v365
  %v428 = vpack.c.b16 %v368, %v367
  %v429 = vpack.c.b16 %v370, %v369
  %v430 = vpack.c.b16 %v372, %v371
  %v431 = vpack.c.b16 %v374, %v373
  %v432 = vpack.c.b16 %v376, %v375
  %v433 = vpack.c.b16 %v378, %v377
  %v434 = vpack.c.b16 %v380, %v379
  %v435 = vpack.c.b16 %v382, %v381
  %v436 = vpack.c.b16 %v384, %v383
  %v437 = vpack.c.b16 %v386, %v385
  %v438 = vpack.c.b16 %v388, %v387
  %v439 = vpack.c.b16 %v390, %v389
  %v490 = vsel %vm177, %v67, 0
  %492 = vmatpush.bf16.msra.mxu0 %v398
  %493 = vmatpush.bf16.msra.mxu0 %v397
  %494 = vmatpush.bf16.msra.mxu0 %v396
  %495 = vmatpush.bf16.msra.mxu0 %v395
  %496 = vmatpush.bf16.msra.mxu0 %v394
  %497 = vmatpush.bf16.msra.mxu0 %v393
  %498 = vmatpush.bf16.msra.mxu0 %v392
  %499 = vmatpush.bf16.msra.mxu0 %v391
  %500 = vmatmul.bf16.gmra.mxu0 %v61
  %v501 = vpop.f32.mrf.mxu0
  %v502 = vadd.f32 %v191, %v501
  %v503 = vpop.f32.mrf.mxu0
  %v504 = vadd.f32 %v193, %v503
  %505 = vdwg.mxu0
  %506 = vmatpush.bf16.msra.mxu0 %v406
  %507 = vmatpush.bf16.msra.mxu0 %v405
  %508 = vmatpush.bf16.msra.mxu0 %v404
  %509 = vmatpush.bf16.msra.mxu0 %v403
  %510 = vmatpush.bf16.msra.mxu0 %v402
  %511 = vmatpush.bf16.msra.mxu0 %v401
  %512 = vmatpush.bf16.msra.mxu0 %v400
  %513 = vmatpush.bf16.msra.mxu0 %v399
  %514 = vmatmul.bf16.gmra.mxu0 %v62
  %v515 = vpop.f32.mrf.mxu0
  %v516 = vadd.f32 %v502, %v515
  %v517 = vpop.f32.mrf.mxu0
  %v518 = vadd.f32 %v504, %v517
  %519 = vdwg.mxu0
  %520 = vmatpush.bf16.msra.mxu0 %v414
  %521 = vmatpush.bf16.msra.mxu0 %v413
  %522 = vmatpush.bf16.msra.mxu0 %v412
  %523 = vmatpush.bf16.msra.mxu0 %v411
  %524 = vmatpush.bf16.msra.mxu0 %v410
  %525 = vmatpush.bf16.msra.mxu0 %v409
  %526 = vmatpush.bf16.msra.mxu0 %v408
  %527 = vmatpush.bf16.msra.mxu0 %v407
  %528 = vmatmul.bf16.gmra.mxu0 %v63
  %v529 = vpop.f32.mrf.mxu0
  %v530 = vadd.f32 %v516, %v529
  %v531 = vpop.f32.mrf.mxu0
  %v532 = vadd.f32 %v518, %v531
  %533 = vdwg.mxu0
  %534 = vmatpush.bf16.msra.mxu0 %v422
  %535 = vmatpush.bf16.msra.mxu0 %v421
  %536 = vmatpush.bf16.msra.mxu0 %v420
  %537 = vmatpush.bf16.msra.mxu0 %v419
  %538 = vmatpush.bf16.msra.mxu0 %v418
  %539 = vmatpush.bf16.msra.mxu0 %v417
  %540 = vmatpush.bf16.msra.mxu0 %v416
  %541 = vmatpush.bf16.msra.mxu0 %v415
  %542 = vmatmul.bf16.gmra.mxu0 %v64
  %v543 = vpop.f32.mrf.mxu0
  %v544 = vadd.f32 %v530, %v543
  %v545 = vpop.f32.mrf.mxu0
  %v546 = vadd.f32 %v532, %v545
  %547 = vdwg.mxu0
  %548 = vmatpush.bf16.msra.mxu0 %v430
  %549 = vmatpush.bf16.msra.mxu0 %v429
  %550 = vmatpush.bf16.msra.mxu0 %v428
  %551 = vmatpush.bf16.msra.mxu0 %v427
  %552 = vmatpush.bf16.msra.mxu0 %v426
  %553 = vmatpush.bf16.msra.mxu0 %v425
  %554 = vmatpush.bf16.msra.mxu0 %v424
  %555 = vmatpush.bf16.msra.mxu0 %v423
  %556 = vmatmul.bf16.gmra.mxu0 %v65
  %v557 = vpop.f32.mrf.mxu0
  %v558 = vadd.f32 %v544, %v557
  %v559 = vpop.f32.mrf.mxu0
  %v560 = vadd.f32 %v546, %v559
  %561 = vdwg.mxu0
  %562 = vmatpush.bf16.msra.mxu0 %v438
  %563 = vmatpush.bf16.msra.mxu0 %v437
  %564 = vmatpush.bf16.msra.mxu0 %v436
  %565 = vmatpush.bf16.msra.mxu0 %v435
  %566 = vmatpush.bf16.msra.mxu0 %v434
  %567 = vmatpush.bf16.msra.mxu0 %v433
  %568 = vmatpush.bf16.msra.mxu0 %v432
  %569 = vmatpush.bf16.msra.mxu0 %v431
  %570 = vmatmul.bf16.gmra.mxu0 %v66
  %v571 = vpop.f32.mrf.mxu0
  %v572 = vadd.f32 %v558, %v571
  %v573 = vpop.f32.mrf.mxu0
  %v574 = vadd.f32 %v560, %v573
  %575 = vdwg.mxu0
  %576 = vmatpush.bf16.msra.mxu0 0
  %577 = vmatpush.bf16.msra.mxu0 0
  %578 = vmatpush.bf16.msra.mxu0 0
  %579 = vmatpush.bf16.msra.mxu0 0
  %580 = vmatpush.bf16.msra.mxu0 0
  %581 = vmatpush.bf16.msra.mxu0 0
  %582 = vmatpush.bf16.msra.mxu0 0
  %583 = vmatpush.bf16.msra.mxu0 %v439
  %584 = vmatmul.bf16.gmra.mxu0 %v490
  %v585 = vpop.f32.mrf.mxu0
  %v586 = vadd.f32 %v572, %v585
  %v587 = vpop.f32.mrf.mxu0
  %v588 = vadd.f32 %v574, %v587
  %589 = vdwg.mxu0
  %v590 = vld [vmem:[%s4] sm:$0x1]
  %v592 = vperm.slane %v590, 0
  %v594 = vadd.f32 %v586, %v592
  %v595 = vadd.f32 %v588, %v592
  %vm596 = vcmp.ge.f32.partialorder %v594, 0.0
  %vm597 = vcmp.ge.f32.partialorder %v595, 0.0
  %v598 = vmul.f32 %v594, 0.01
  %v599 = vmul.f32 %v595, 0.01
  %v600 = vsel %vm596, %v594, %v598
  %v601 = vsel %vm597, %v595, %v599
  %v602 = vpack.c.bf16 %v601, %v600
  %v603 = vld [vmem:[%s5] sm:$0xf]
  %v604 = vld [vmem:[%s5 + $0x4] sm:$0xf]
  %v605 = vld [vmem:[%s5 + $0x8] sm:$0xf]
  %v606 = vld [vmem:[%s5 + $0xc] sm:$0xf]
  %v607 = vld [vmem:[%s5 + $0x10] sm:$0xf]
  %v608 = vld [vmem:[%s5 + $0x14] sm:$0xf]
  %v609 = vld [vmem:[%s5 + $0x18] sm:$0xf]
  %v610 = vld [vmem:[%s5 + $0x1c] sm:$0xf]
  %v611 = vld [vmem:[%s5 + $0x20] sm:$0xf]
  %v612 = vld [vmem:[%s5 + $0x24] sm:$0xf]
  %v613 = vld [vmem:[%s5 + $0x28] sm:$0xf]
  %v614 = vld [vmem:[%s5 + $0x2c] sm:$0xf]
  %v615 = vld [vmem:[%s5 + $0x30] sm:$0xf]
  %v616 = vld [vmem:[%s5 + $0x34] sm:$0xf]
  %v617 = vld [vmem:[%s5 + $0x38] sm:$0xf]
  %v618 = vld [vmem:[%s5 + $0x3c] sm:$0xf]
  %v619 = vld [vmem:[%s6] sm:$0x1]
  %v621 = vperm.slane %v619, 0
  %v639 = vunpack.c.l.b16 %v603
  %v640 = vunpack.c.l.b16 %v604
  %v641 = vunpack.c.l.b16 %v605
  %v642 = vunpack.c.l.b16 %v606
  %v643 = vunpack.c.l.b16 %v607
  %v644 = vunpack.c.l.b16 %v608
  %v645 = vunpack.c.l.b16 %v609
  %v646 = vunpack.c.l.b16 %v610
  %v647 = vunpack.c.l.b16 %v611
  %v648 = vunpack.c.l.b16 %v612
  %v649 = vunpack.c.l.b16 %v613
  %v650 = vunpack.c.l.b16 %v614
  %v651 = vunpack.c.l.b16 %v615
  %v652 = vunpack.c.l.b16 %v616
  %v653 = vunpack.c.l.b16 %v617
  %v654 = vunpack.c.l.b16 %v618
  %v655 = vpack.c.b16 %v640, %v639
  %v656 = vpack.c.b16 %v642, %v641
  %v657 = vpack.c.b16 %v644, %v643
  %v658 = vpack.c.b16 %v646, %v645
  %v659 = vpack.c.b16 %v648, %v647
  %v660 = vpack.c.b16 %v650, %v649
  %v661 = vpack.c.b16 %v652, %v651
  %v662 = vpack.c.b16 %v654, %v653
  %671 = vmatpush.bf16.msra.mxu0 %v662
  %672 = vmatpush.bf16.msra.mxu0 %v661
  %673 = vmatpush.bf16.msra.mxu0 %v660
  %674 = vmatpush.bf16.msra.mxu0 %v659
  %675 = vmatpush.bf16.msra.mxu0 %v658
  %676 = vmatpush.bf16.msra.mxu0 %v657
  %677 = vmatpush.bf16.msra.mxu0 %v656
  %678 = vmatpush.bf16.msra.mxu0 %v655
  %679 = vmatmul.bf16.gmra.mxu0 %v602
  %v680 = vpop.f32.mrf.mxu0
  %v681 = vadd.f32 %v621, %v680
  %v682 = vpop.f32.mrf.mxu0
  %v683 = vadd.f32 %v621, %v682
  %684 = vdwg.mxu0
  %vm685 = vcmp.ge.f32.partialorder %v681, 0.0
  %vm686 = vcmp.ge.f32.partialorder %v683, 0.0
  %v687 = vmul.f32 %v681, 0.01
  %v688 = vmul.f32 %v683, 0.01
  %v689 = vsel %vm685, %v681, %v687
  %v690 = vsel %vm686, %v683, %v688
  %v691 = vpack.c.bf16 %v690, %v689
  %v692 = vld [vmem:[%s7] sm:$0xf]
  %v693 = vld [vmem:[%s7 + $0x4] sm:$0xf]
  %v694 = vld [vmem:[%s7 + $0x8] sm:$0xf]
  %v695 = vld [vmem:[%s7 + $0xc] sm:$0xf]
  %v696 = vld [vmem:[%s7 + $0x10] sm:$0xf]
  %v697 = vld [vmem:[%s7 + $0x14] sm:$0xf]
  %v698 = vld [vmem:[%s7 + $0x18] sm:$0xf]
  %v699 = vld [vmem:[%s7 + $0x1c] sm:$0xf]
  %v700 = vld [vmem:[%s7 + $0x20] sm:$0xf]
  %v701 = vld [vmem:[%s7 + $0x24] sm:$0xf]
  %v702 = vld [vmem:[%s7 + $0x28] sm:$0xf]
  %v703 = vld [vmem:[%s7 + $0x2c] sm:$0xf]
  %v704 = vld [vmem:[%s7 + $0x30] sm:$0xf]
  %v705 = vld [vmem:[%s7 + $0x34] sm:$0xf]
  %v706 = vld [vmem:[%s7 + $0x38] sm:$0xf]
  %v707 = vld [vmem:[%s7 + $0x3c] sm:$0xf]
  %v708 = vld [vmem:[%s8] sm:$0x1]
  %v710 = vperm.slane %v708, 0
  %v728 = vunpack.c.l.b16 %v692
  %v729 = vunpack.c.l.b16 %v693
  %v730 = vunpack.c.l.b16 %v694
  %v731 = vunpack.c.l.b16 %v695
  %v732 = vunpack.c.l.b16 %v696
  %v733 = vunpack.c.l.b16 %v697
  %v734 = vunpack.c.l.b16 %v698
  %v735 = vunpack.c.l.b16 %v699
  %v736 = vunpack.c.l.b16 %v700
  %v737 = vunpack.c.l.b16 %v701
  %v738 = vunpack.c.l.b16 %v702
  %v739 = vunpack.c.l.b16 %v703
  %v740 = vunpack.c.l.b16 %v704
  %v741 = vunpack.c.l.b16 %v705
  %v742 = vunpack.c.l.b16 %v706
  %v743 = vunpack.c.l.b16 %v707
  %v744 = vpack.c.b16 %v729, %v728
  %v745 = vpack.c.b16 %v731, %v730
  %v746 = vpack.c.b16 %v733, %v732
  %v747 = vpack.c.b16 %v735, %v734
  %v748 = vpack.c.b16 %v737, %v736
  %v749 = vpack.c.b16 %v739, %v738
  %v750 = vpack.c.b16 %v741, %v740
  %v751 = vpack.c.b16 %v743, %v742
  %760 = vmatpush.bf16.msra.mxu0 %v751
  %761 = vmatpush.bf16.msra.mxu0 %v750
  %762 = vmatpush.bf16.msra.mxu0 %v749
  %763 = vmatpush.bf16.msra.mxu0 %v748
  %764 = vmatpush.bf16.msra.mxu0 %v747
  %765 = vmatpush.bf16.msra.mxu0 %v746
  %766 = vmatpush.bf16.msra.mxu0 %v745
  %767 = vmatpush.bf16.msra.mxu0 %v744
  %768 = vmatmul.bf16.gmra.mxu0 %v691
  %v769 = vpop.f32.mrf.mxu0
  %v770 = vadd.f32 %v710, %v769
  %v771 = vpop.f32.mrf.mxu0
  %v772 = vadd.f32 %v710, %v771
  %773 = vdwg.mxu0
  %vm774 = vcmp.ge.f32.partialorder %v770, 0.0
  %vm775 = vcmp.ge.f32.partialorder %v772, 0.0
  %v776 = vmul.f32 %v770, 0.01
  %v777 = vmul.f32 %v772, 0.01
  %v778 = vsel %vm774, %v770, %v776
  %v779 = vsel %vm775, %v772, %v777
  %v780 = vpack.c.bf16 %v779, %v778
  %v781 = vld [vmem:[%s9] sm:$0xf]
  %v782 = vld [vmem:[%s9 + $0x4] sm:$0xf]
  %v783 = vld [vmem:[%s9 + $0x8] sm:$0xf]
  %v784 = vld [vmem:[%s9 + $0xc] sm:$0xf]
  %v785 = vld [vmem:[%s9 + $0x10] sm:$0xf]
  %v786 = vld [vmem:[%s9 + $0x14] sm:$0xf]
  %v787 = vld [vmem:[%s9 + $0x18] sm:$0xf]
  %v788 = vld [vmem:[%s9 + $0x1c] sm:$0xf]
  %v789 = vld [vmem:[%s9 + $0x20] sm:$0xf]
  %v790 = vld [vmem:[%s9 + $0x24] sm:$0xf]
  %v791 = vld [vmem:[%s9 + $0x28] sm:$0xf]
  %v792 = vld [vmem:[%s9 + $0x2c] sm:$0xf]
  %v793 = vld [vmem:[%s9 + $0x30] sm:$0xf]
  %v794 = vld [vmem:[%s9 + $0x34] sm:$0xf]
  %v795 = vld [vmem:[%s9 + $0x38] sm:$0xf]
  %v796 = vld [vmem:[%s9 + $0x3c] sm:$0xf]
  %v797 = vld [vmem:[%s10] sm:$0x1]
  %v799 = vperm.slane %v797, 0
  %v817 = vunpack.c.l.b16 %v781
  %v818 = vunpack.c.l.b16 %v782
  %v819 = vunpack.c.l.b16 %v783
  %v820 = vunpack.c.l.b16 %v784
  %v821 = vunpack.c.l.b16 %v785
  %v822 = vunpack.c.l.b16 %v786
  %v823 = vunpack.c.l.b16 %v787
  %v824 = vunpack.c.l.b16 %v788
  %v825 = vunpack.c.l.b16 %v789
  %v826 = vunpack.c.l.b16 %v790
  %v827 = vunpack.c.l.b16 %v791
  %v828 = vunpack.c.l.b16 %v792
  %v829 = vunpack.c.l.b16 %v793
  %v830 = vunpack.c.l.b16 %v794
  %v831 = vunpack.c.l.b16 %v795
  %v832 = vunpack.c.l.b16 %v796
  %v833 = vpack.c.b16 %v818, %v817
  %v834 = vpack.c.b16 %v820, %v819
  %v835 = vpack.c.b16 %v822, %v821
  %v836 = vpack.c.b16 %v824, %v823
  %v837 = vpack.c.b16 %v826, %v825
  %v838 = vpack.c.b16 %v828, %v827
  %v839 = vpack.c.b16 %v830, %v829
  %v840 = vpack.c.b16 %v832, %v831
  %849 = vmatpush.bf16.msra.mxu0 %v840
  %850 = vmatpush.bf16.msra.mxu0 %v839
  %851 = vmatpush.bf16.msra.mxu0 %v838
  %852 = vmatpush.bf16.msra.mxu0 %v837
  %853 = vmatpush.bf16.msra.mxu0 %v836
  %854 = vmatpush.bf16.msra.mxu0 %v835
  %855 = vmatpush.bf16.msra.mxu0 %v834
  %856 = vmatpush.bf16.msra.mxu0 %v833
  %857 = vmatmul.bf16.gmra.mxu0 %v780
  %v858 = vpop.f32.mrf.mxu0
  %v859 = vadd.f32 %v799, %v858
  %v860 = vpop.f32.mrf.mxu0
  %v861 = vadd.f32 %v799, %v860
  %862 = vdwg.mxu0
  %vm863 = vcmp.ge.f32.partialorder %v859, 0.0
  %vm864 = vcmp.ge.f32.partialorder %v861, 0.0
  %v865 = vmul.f32 %v859, 0.01
  %v866 = vmul.f32 %v861, 0.01
  %v867 = vsel %vm863, %v859, %v865
  %v868 = vsel %vm864, %v861, %v866
  %v869 = vld [vmem:[%s11] sm:$0x1]
  %v871 = vperm.slane %v869, 0
  %v873 = vmul.f32 %v867, %v871
  %v874 = vmul.f32 %v868, %v871
  %875 = vadd.xlane.f32.xlu0 %v873
  %v876 = vpop.xlane.xlu0 %875
  %vm877 = vcmask 1041408
  %v878 = vsel %vm877, %v874, 0.0
  %879 = vadd.xlane.f32.xlu0 %v878
  %v880 = vpop.xlane.xlu0 %879
  %v881 = vld [vmem:[#allocation2] sm:$0x1]
  %v883 = vperm.slane %v881, 0
  %v885 = vadd.f32 %v876, %v883
  %v886 = vadd.f32 %v880, %v883
  %vm887 = vcmask 7168
  %888 = vst.msk [vmem:[%s13] sm:$0xff] %vm887, %v885
  %vm889 = vcmask 1024
  %890 = vst.msk [vmem:[%s13 + $0x8] sm:$0x3] %vm889, %v886
  // Predicated region
  $region54: #{discriminator_forward.1} parent=0 // pred_check
    _
  $region55: #{discriminator_forward.1} parent=0 // pred_check_branch
    %892 = sbr.rel (0) target = $region57
  $region56: #{discriminator_forward.1} parent=0 // pred_region
    _
  $region57: #{discriminator_forward.1} parent=0 // pred_fallthru
    _
  // Predicated region
  $region58: #{discriminator_forward.1} parent=0 // pred_check
    _
  $region59: #{discriminator_forward.1} parent=0 // pred_check_branch
    %894 = sbr.rel (0) target = $region61
  $region60: #{discriminator_forward.1} parent=0 // pred_region
    _
  $region61: #{discriminator_forward.1} parent=0 // pred_fallthru
    _

</llo_original>
